<compile_context>
chip_gen: v5e
topology: v5e:2x2
jax: 0.10.0
libtpu: 0.0.40
codegen_flags: <defaults>
</compile_context>

<pallas_src>
import functools

import jax
import jax.numpy as jnp
from jax import lax
from jax.experimental import pallas as pl
from jax.experimental.pallas import tpu as pltpu


def _mlp_kernel(x_ref, w1_ref, b1_ref, w2_ref, b2_ref, o_ref):
    # x_ref : (TB, 784)  f32   (cast to bf16 in-kernel; avoids a wrapper-side HBM round trip)
    # w1_ref: (128, 784) bf16  (PyTorch layout: (out, in))
    # b1_ref: (1, 128)   f32
    # w2_ref: (128, 128) bf16  (PyTorch layout padded on the out dim: rows 10..127 are 0)
    # b2_ref: (1, 128)   f32   (cols 10..127 are 0)
    # o_ref : (TB, 128)  bf16  (lane-dense; sliced to 10 logits outside the kernel)
    x = x_ref[...].astype(jnp.bfloat16)

    # fc1: x @ w1.T  (contract dim 1 of both) -> f32 accumulation on the MXU.
    h = lax.dot_general(
        x, w1_ref[...],
        dimension_numbers=(((1,), (1,)), ((), ())),
        preferred_element_type=jnp.float32,
    ) + b1_ref[...]
    h = jnp.maximum(h, 0.0)  # ReLU in f32 on the VPU

    # fc2: bf16 x bf16 on the MXU (f32 accumulate), lane-dense (TB, 128) result.
    y = lax.dot_general(
        h.astype(jnp.bfloat16), w2_ref[...],
        dimension_numbers=(((1,), (1,)), ((), ())),
        preferred_element_type=jnp.float32,
    ) + b2_ref[...]

    o_ref[...] = y.astype(o_ref.dtype)


def _round_up(n: int, m: int) -> int:
    return ((n + m - 1) // m) * m


@functools.partial(jax.jit, static_argnames=("max_tb",))
def simple_nn_forward(x, w1, b1, w2, b2, *, max_tb: int = 2048):
    """Forward pass of SimpleNN.

    x : (B, 1, 28, 28) or (B, 784) float32
    w1: (128, 784)  PyTorch Linear weight layout (out, in)
    b1: (128,)
    w2: (10, 128)
    b2: (10,)
    returns (B, 10) float32
    """
    in_f, hid, out_f = 28 * 28, 128, 10
    out_pad = 128  # lane-dense output width

    x2d = x.reshape(-1, in_f).astype(jnp.float32)
    B = x2d.shape[0]

    # Tile selection:
    #   * multiple of 16 (bf16-friendly sublane tiling, covers the (8,128) constraint),
    #   * divides the padded batch tightly (avoid ~2x dead-row work),
    #   * >= 2 grid steps for non-tiny batches so both v7x TensorCores get work.
    nt = pl.cdiv(B, max_tb)
    if B >= 32:
        nt = max(nt, 2)
    tb = _round_up(pl.cdiv(B, nt), 16)
    b_pad = _round_up(B, tb)
    if b_pad != B:
        x2d = jnp.pad(x2d, ((0, b_pad - B), (0, 0)))

    # Weights: fc1/fc2 in bf16 (MXU-native), biases f32 for the VPU adds.
    w1_bf16 = jnp.asarray(w1, jnp.bfloat16)                       # (128, 784)
    b1_r = jnp.asarray(b1, jnp.float32)[None, :]                  # (1, 128)

    # Pad fc2 to 128 output columns (zero rows/cols) for lane-dense stores.
    w2_pad = jnp.zeros((out_pad, hid), jnp.bfloat16).at[:out_f].set(
        jnp.asarray(w2, jnp.bfloat16))                            # (128, 128)
    b2_pad = jnp.zeros((1, out_pad), jnp.float32).at[0, :out_f].set(
        jnp.asarray(b2, jnp.float32))                             # (1, 128)

    grid = (b_pad // tb,)

    flops = 2 * b_pad * in_f * hid + 2 * b_pad * hid * out_pad
    bytes_accessed = (
        b_pad * in_f * 4            # x (f32, read once)
        + hid * in_f * 2            # w1 (bf16)
        + hid * 4                   # b1
        + out_pad * hid * 2         # w2 (bf16)
        + out_pad * 4               # b2
        + b_pad * out_pad * 2       # out (bf16)
    )

    out = pl.pallas_call(
        _mlp_kernel,
        out_shape=jax.ShapeDtypeStruct((b_pad, out_pad), jnp.bfloat16),
        grid=grid,
        in_specs=[
            pl.BlockSpec((tb, in_f), lambda i: (i, 0)),       # x tile (pipelined)
            pl.BlockSpec((hid, in_f), lambda i: (0, 0)),      # w1 (constant index -> resident)
            pl.BlockSpec((1, hid), lambda i: (0, 0)),         # b1
            pl.BlockSpec((out_pad, hid), lambda i: (0, 0)),   # w2 (padded)
            pl.BlockSpec((1, out_pad), lambda i: (0, 0)),     # b2 (padded)
        ],
        out_specs=pl.BlockSpec((tb, out_pad), lambda i: (i, 0)),
        compiler_params=pltpu.CompilerParams(
            dimension_semantics=("parallel",),   # batch tiles independent -> megacore sharding
            vmem_limit_bytes=48 << 20,           # headroom for TB=2048 f32 x double-buffer
        ),
        cost_estimate=pl.CostEstimate(
            flops=flops, transcendentals=0, bytes_accessed=bytes_accessed),
    )(x2d, w1_bf16, b1_r, w2_pad, b2_pad)

    # Drop batch padding + lane padding outside the kernel; f32 logits for downstream use.
    return out[:B, :out_f].astype(jnp.float32)


def _reference(x, w1, b1, w2, b2):
    x2d = x.reshape(-1, 28 * 28).astype(jnp.float32)
    h = jnp.maximum(x2d @ w1.T + b1, 0.0)
    return h @ w2.T + b2


if __name__ == "__main__":
    key = jax.random.PRNGKey(0)
    kx, k1, k2, k3, k4 = jax.random.split(key, 5)

    B = 8
    # MNIST-like input: NCHW (B, 1, 28, 28)
    x = jax.random.normal(kx, (B, 1, 28, 28), dtype=jnp.float32)

    # Deterministic parameter init (shapes match nn.Linear(784,128), nn.Linear(128,10)).
    w1 = jax.random.normal(k1, (128, 28 * 28), dtype=jnp.float32) * 0.02
    b1 = jax.random.normal(k2, (128,), dtype=jnp.float32) * 0.02
    w2 = jax.random.normal(k3, (10, 128), dtype=jnp.float32) * 0.02
    b2 = jax.random.normal(k4, (10,), dtype=jnp.float32) * 0.02

    y = simple_nn_forward(x, w1, b1, w2, b2)
    y = jax.block_until_ready(y)

    y_ref = _reference(x, w1, b1, w2, b2)
    assert y.shape == (B, 10)
    # bf16 matmul operands + bf16 output store -> ~0.5% relative error vs pure-f32 reference.
    assert jnp.allclose(y, y_ref, atol=3e-2, rtol=3e-2), "mismatch vs reference"

    print("KERNEL_OK")
</pallas_src>

<mosaic_0001>
module attributes {stable_mosaic.version = 11 : i64} {
  func.func @_mlp_kernel(%arg0: i32, %arg1: memref<16x784xf32, #tpu.memory_space<vmem>>, %arg2: memref<128x784xbf16, #tpu.memory_space<vmem>>, %arg3: memref<1x128xf32, #tpu.memory_space<vmem>>, %arg4: memref<128x128xbf16, #tpu.memory_space<vmem>>, %arg5: memref<1x128xf32, #tpu.memory_space<vmem>>, %arg6: memref<16x128xbf16, #tpu.memory_space<vmem>>) attributes {dimension_semantics = [#tpu.dimension_semantics<parallel>], iteration_bounds = array<i64: 1>, scalar_prefetch = 0 : i64, scratch_operands = 0 : i64, tpu.core_type = #tpu.core_type<tc>, window_params = [{transform_indices = @transform_0, window_bounds = array<i64: 16, 784>}, {pipeline_mode = #tpu.pipeline_mode<synchronous>, transform_indices = @transform_1, window_bounds = array<i64: 128, 784>}, {pipeline_mode = #tpu.pipeline_mode<synchronous>, transform_indices = @transform_2, window_bounds = array<i64: 1, 128>}, {pipeline_mode = #tpu.pipeline_mode<synchronous>, transform_indices = @transform_3, window_bounds = array<i64: 128, 128>}, {pipeline_mode = #tpu.pipeline_mode<synchronous>, transform_indices = @transform_4, window_bounds = array<i64: 1, 128>}, {transform_indices = @transform_5, window_bounds = array<i64: 16, 128>}]} {
    %c0 = arith.constant 0 : index
    %c0_0 = arith.constant 0 : index
    %0 = vector.load %arg1[%c0, %c0_0] : memref<16x784xf32, #tpu.memory_space<vmem>>, vector<16x784xf32>
    %1 = arith.truncf %0 : vector<16x784xf32> to vector<16x784xbf16>
    %c0_1 = arith.constant 0 : index
    %c0_2 = arith.constant 0 : index
    %2 = vector.load %arg2[%c0_1, %c0_2] : memref<128x784xbf16, #tpu.memory_space<vmem>>, vector<128x784xbf16>
    %cst = arith.constant dense<0.000000e+00> : vector<16x128xf32>
    %3 = tpu.matmul %1, %2, %cst {dimension_numbers = #tpu.dot_dimension_numbers<[1], [1], [0], [0], [0, 0, 1, 0], [], []>} : vector<16x784xbf16>, vector<128x784xbf16>, vector<16x128xf32> -> vector<16x128xf32>
    %c0_3 = arith.constant 0 : index
    %c0_4 = arith.constant 0 : index
    %4 = vector.load %arg3[%c0_3, %c0_4] : memref<1x128xf32, #tpu.memory_space<vmem>>, vector<1x128xf32>
    %5 = vector.broadcast %4 : vector<1x128xf32> to vector<16x128xf32>
    %6 = arith.addf %3, %5 : vector<16x128xf32>
    %cst_5 = arith.constant 0.000000e+00 : f32
    %7 = vector.broadcast %cst_5 : f32 to vector<16x128xf32>
    %8 = arith.maximumf %6, %7 : vector<16x128xf32>
    %9 = arith.truncf %8 : vector<16x128xf32> to vector<16x128xbf16>
    %c0_6 = arith.constant 0 : index
    %c0_7 = arith.constant 0 : index
    %10 = vector.load %arg4[%c0_6, %c0_7] : memref<128x128xbf16, #tpu.memory_space<vmem>>, vector<128x128xbf16>
    %cst_8 = arith.constant dense<0.000000e+00> : vector<16x128xf32>
    %11 = tpu.matmul %9, %10, %cst_8 {dimension_numbers = #tpu.dot_dimension_numbers<[1], [1], [0], [0], [0, 0, 1, 0], [], []>} : vector<16x128xbf16>, vector<128x128xbf16>, vector<16x128xf32> -> vector<16x128xf32>
    %c0_9 = arith.constant 0 : index
    %c0_10 = arith.constant 0 : index
    %12 = vector.load %arg5[%c0_9, %c0_10] : memref<1x128xf32, #tpu.memory_space<vmem>>, vector<1x128xf32>
    %13 = vector.broadcast %12 : vector<1x128xf32> to vector<16x128xf32>
    %14 = arith.addf %11, %13 : vector<16x128xf32>
    %15 = arith.truncf %14 : vector<16x128xf32> to vector<16x128xbf16>
    %c0_11 = arith.constant 0 : index
    %c0_12 = arith.constant 0 : index
    %16 = vector.load %arg6[%c0_11, %c0_12] : memref<16x128xbf16, #tpu.memory_space<vmem>>, vector<16x128xbf16>
    tpu.vector_store %arg6[%c0_11, %c0_12], %15 {strides = array<i32>} : memref<16x128xbf16, #tpu.memory_space<vmem>>, vector<16x128xbf16>,
    return
  }
  func.func @transform_0(%arg0: i32) -> (i32, i32) {
    %c0_i32 = arith.constant 0 : i32
    %c0_i32_0 = arith.constant 0 : i32
    return %arg0, %c0_i32 : i32, i32
  }
  func.func @transform_1(%arg0: i32) -> (i32, i32) {
    %c0_i32 = arith.constant 0 : i32
    %c0_i32_0 = arith.constant 0 : i32
    %c0_i32_1 = arith.constant 0 : i32
    return %c0_i32, %c0_i32_0 : i32, i32
  }
  func.func @transform_2(%arg0: i32) -> (i32, i32) {
    %c0_i32 = arith.constant 0 : i32
    %c0_i32_0 = arith.constant 0 : i32
    %c0_i32_1 = arith.constant 0 : i32
    return %c0_i32, %c0_i32_0 : i32, i32
  }
  func.func @transform_3(%arg0: i32) -> (i32, i32) {
    %c0_i32 = arith.constant 0 : i32
    %c0_i32_0 = arith.constant 0 : i32
    %c0_i32_1 = arith.constant 0 : i32
    return %c0_i32, %c0_i32_0 : i32, i32
  }
  func.func @transform_4(%arg0: i32) -> (i32, i32) {
    %c0_i32 = arith.constant 0 : i32
    %c0_i32_0 = arith.constant 0 : i32
    %c0_i32_1 = arith.constant 0 : i32
    return %c0_i32, %c0_i32_0 : i32, i32
  }
  func.func @transform_5(%arg0: i32) -> (i32, i32) {
    %c0_i32 = arith.constant 0 : i32
    %c0_i32_0 = arith.constant 0 : i32
    return %arg0, %c0_i32 : i32, i32
  }
}

</mosaic_0001>

<llo_original>
// kernel: simple_nn_forward.1
$region0: #{simple_nn_forward.1}
  #allocation0 [shape = 'u32[]', space=smem, size = 0x4, offset = 0x4, fixed_abs, tag = 'smem constant byte address 0x4 - core index']
  #allocation1 [shape = 'u32[72,128]{1,0:T(1,128)}', space=vmem, size = 0x9000, scoped, tag = 'internal scratch']
  %s0 = inlined_call_operand.vmem [shape: f32[16,784], index: 0, kind: input, shape index: {}]
  %s1 = inlined_call_operand.vmem [shape: bf16[128,784], index: 1, kind: input, shape index: {}]
  %s2 = inlined_call_operand.vmem [shape: f32[1,128], index: 2, kind: input, shape index: {}]
  %s3 = inlined_call_operand.vmem [shape: bf16[128,128], index: 3, kind: input, shape index: {}]
  %s4 = inlined_call_operand.vmem [shape: f32[1,128], index: 4, kind: input, shape index: {}]
  %s5 = inlined_call_operand.vmem [shape: bf16[16,128], index: 5, kind: output, shape index: {}]
  %s6 = sld [smem:[#allocation0]]
  $region30: #{simple_nn_forward.1} parent=0
    _
  %s8 = ssub.s32 1, %s6
  %s9 = scalar_select 0, %s8, %s6
  // Predicated region
  $region2: #{simple_nn_forward.1} parent=0 // pred_check
    _
  $region3: #{simple_nn_forward.1} parent=0 // pred_check_branch
    %11 = sbr.rel (0) target = $region5
  $region4: #{simple_nn_forward.1} parent=0 // pred_region
    _
  $region5: #{simple_nn_forward.1} parent=0 // pred_fallthru
    _
  // Predicated region
  $region6: #{simple_nn_forward.1} parent=0 // pred_check
    _
  $region7: #{simple_nn_forward.1} parent=0 // pred_check_branch
    %13 = sbr.rel (0) target = $region9
  $region8: #{simple_nn_forward.1} parent=0 // pred_region
    _
  $region9: #{simple_nn_forward.1} parent=0 // pred_fallthru
    _
  // Predicated region
  $region10: #{simple_nn_forward.1} parent=0 // pred_check
    _
  $region11: #{simple_nn_forward.1} parent=0 // pred_check_branch
    %15 = sbr.rel (0) target = $region13
  $region12: #{simple_nn_forward.1} parent=0 // pred_region
    _
  $region13: #{simple_nn_forward.1} parent=0 // pred_fallthru
    _
  // Predicated region
  $region14: #{simple_nn_forward.1} parent=0 // pred_check
    _
  $region15: #{simple_nn_forward.1} parent=0 // pred_check_branch
    %17 = sbr.rel (0) target = $region17
  $region16: #{simple_nn_forward.1} parent=0 // pred_region
    _
  $region17: #{simple_nn_forward.1} parent=0 // pred_fallthru
    _
  // Predicated region
  $region18: #{simple_nn_forward.1} parent=0 // pred_check
    _
  $region19: #{simple_nn_forward.1} parent=0 // pred_check_branch
    %19 = sbr.rel (0) target = $region21
  $region20: #{simple_nn_forward.1} parent=0 // pred_region
    _
  $region21: #{simple_nn_forward.1} parent=0 // pred_fallthru
    _
  %v20 = vld [vmem:[%s0] sm:$0xff]
  %v21 = vld [vmem:[%s0 + $0x8] sm:$0xff]
  %v22 = vld [vmem:[%s0 + $0x10] sm:$0xff]
  %v23 = vld [vmem:[%s0 + $0x18] sm:$0xff]
  %v24 = vld [vmem:[%s0 + $0x20] sm:$0xff]
  %v25 = vld [vmem:[%s0 + $0x28] sm:$0xff]
  %v26 = vld [vmem:[%s0 + $0x30] sm:$0xff]
  %v27 = vld [vmem:[%s0 + $0x38] sm:$0xff]
  %v28 = vld [vmem:[%s0 + $0x40] sm:$0xff]
  %v29 = vld [vmem:[%s0 + $0x48] sm:$0xff]
  %v30 = vld [vmem:[%s0 + $0x50] sm:$0xff]
  %v31 = vld [vmem:[%s0 + $0x58] sm:$0xff]
  %v32 = vld [vmem:[%s0 + $0x60] sm:$0xff]
  %v33 = vld [vmem:[%s0 + $0x68] sm:$0xff]
  %v34 = vpack.c.bf16 %v27, %v20
  %v35 = vpack.c.bf16 %v28, %v21
  %v36 = vpack.c.bf16 %v29, %v22
  %v37 = vpack.c.bf16 %v30, %v23
  %v38 = vpack.c.bf16 %v31, %v24
  %v39 = vpack.c.bf16 %v32, %v25
  %v40 = vpack.c.bf16 %v33, %v26
  %v41 = vld [vmem:[%s1] sm:$0xff]
  %v42 = vld [vmem:[%s1 + $0x8] sm:$0xff]
  %v43 = vld [vmem:[%s1 + $0x10] sm:$0xff]
  %v44 = vld [vmem:[%s1 + $0x18] sm:$0xf]
  %v45 = vld [vmem:[%s1 + $0x1c] sm:$0xff]
  %v46 = vld [vmem:[%s1 + $0x24] sm:$0xff]
  %v47 = vld [vmem:[%s1 + $0x2c] sm:$0xff]
  %v48 = vld [vmem:[%s1 + $0x34] sm:$0xf]
  %v49 = vld [vmem:[%s1 + $0x38] sm:$0xff]
  %v50 = vld [vmem:[%s1 + $0x40] sm:$0xff]
  %v51 = vld [vmem:[%s1 + $0x48] sm:$0xff]
  %v52 = vld [vmem:[%s1 + $0x50] sm:$0xf]
  %v53 = vld [vmem:[%s1 + $0x54] sm:$0xff]
  %v54 = vld [vmem:[%s1 + $0x5c] sm:$0xff]
  %v55 = vld [vmem:[%s1 + $0x64] sm:$0xff]
  %v56 = vld [vmem:[%s1 + $0x6c] sm:$0xf]
  %v57 = vld [vmem:[%s1 + $0x70] sm:$0xff]
  %v58 = vld [vmem:[%s1 + $0x78] sm:$0xff]
  %v59 = vld [vmem:[%s1 + $0x80] sm:$0xff]
  %v60 = vld [vmem:[%s1 + $0x88] sm:$0xf]
  %v61 = vld [vmem:[%s1 + $0x8c] sm:$0xff]
  %v62 = vld [vmem:[%s1 + $0x94] sm:$0xff]
  %v63 = vld [vmem:[%s1 + $0x9c] sm:$0xff]
  %v64 = vld [vmem:[%s1 + $0xa4] sm:$0xf]
  %v65 = vld [vmem:[%s1 + $0xa8] sm:$0xff]
  %v66 = vld [vmem:[%s1 + $0xb0] sm:$0xff]
  %v67 = vld [vmem:[%s1 + $0xb8] sm:$0xff]
  %v68 = vld [vmem:[%s1 + $0xc0] sm:$0xf]
  %v69 = vld [vmem:[%s1 + $0xc4] sm:$0xff]
  %v70 = vld [vmem:[%s1 + $0xcc] sm:$0xff]
  %v71 = vld [vmem:[%s1 + $0xd4] sm:$0xff]
  %v72 = vld [vmem:[%s1 + $0xdc] sm:$0xf]
  %v73 = vld [vmem:[%s1 + $0xe0] sm:$0xff]
  %v74 = vld [vmem:[%s1 + $0xe8] sm:$0xff]
  %v75 = vld [vmem:[%s1 + $0xf0] sm:$0xff]
  %v76 = vld [vmem:[%s1 + $0xf8] sm:$0xf]
  %v77 = vld [vmem:[%s1 + $0xfc] sm:$0xff]
  %v78 = vld [vmem:[%s1 + $0x104] sm:$0xff]
  %v79 = vld [vmem:[%s1 + $0x10c] sm:$0xff]
  %v80 = vld [vmem:[%s1 + $0x114] sm:$0xf]
  %v81 = vld [vmem:[%s1 + $0x118] sm:$0xff]
  %v82 = vld [vmem:[%s1 + $0x120] sm:$0xff]
  %v83 = vld [vmem:[%s1 + $0x128] sm:$0xff]
  %v84 = vld [vmem:[%s1 + $0x130] sm:$0xf]
  %v85 = vld [vmem:[%s1 + $0x134] sm:$0xff]
  %v86 = vld [vmem:[%s1 + $0x13c] sm:$0xff]
  %v87 = vld [vmem:[%s1 + $0x144] sm:$0xff]
  %v88 = vld [vmem:[%s1 + $0x14c] sm:$0xf]
  %v89 = vld [vmem:[%s1 + $0x150] sm:$0xff]
  %v90 = vld [vmem:[%s1 + $0x158] sm:$0xff]
  %v91 = vld [vmem:[%s1 + $0x160] sm:$0xff]
  %v92 = vld [vmem:[%s1 + $0x168] sm:$0xf]
  %v93 = vld [vmem:[%s1 + $0x16c] sm:$0xff]
  %v94 = vld [vmem:[%s1 + $0x174] sm:$0xff]
  %v95 = vld [vmem:[%s1 + $0x17c] sm:$0xff]
  %v96 = vld [vmem:[%s1 + $0x184] sm:$0xf]
  %v97 = vld [vmem:[%s1 + $0x188] sm:$0xff]
  %v98 = vld [vmem:[%s1 + $0x190] sm:$0xff]
  %v99 = vld [vmem:[%s1 + $0x198] sm:$0xff]
  %v100 = vld [vmem:[%s1 + $0x1a0] sm:$0xf]
  %v101 = vld [vmem:[%s1 + $0x1a4] sm:$0xff]
  %v102 = vld [vmem:[%s1 + $0x1ac] sm:$0xff]
  %v103 = vld [vmem:[%s1 + $0x1b4] sm:$0xff]
  %v104 = vld [vmem:[%s1 + $0x1bc] sm:$0xf]
  %v105 = vld [vmem:[%s2] sm:$0x1]
  %v107 = vperm.slane %v105, 0
  %v173 = vunpack.c.l.b16 %v41
  %v174 = vunpack.c.h.b16 %v41
  %v175 = vunpack.c.l.b16 %v42
  %v176 = vunpack.c.h.b16 %v42
  %v177 = vunpack.c.l.b16 %v43
  %v178 = vunpack.c.h.b16 %v43
  %v179 = vunpack.c.l.b16 %v44
  %v180 = vunpack.c.l.b16 %v45
  %v181 = vunpack.c.h.b16 %v45
  %v182 = vunpack.c.l.b16 %v46
  %v183 = vunpack.c.h.b16 %v46
  %v184 = vunpack.c.l.b16 %v47
  %v185 = vunpack.c.h.b16 %v47
  %v186 = vunpack.c.l.b16 %v48
  %v187 = vunpack.c.l.b16 %v49
  %v188 = vunpack.c.h.b16 %v49
  %v189 = vunpack.c.l.b16 %v50
  %v190 = vunpack.c.h.b16 %v50
  %v191 = vunpack.c.l.b16 %v51
  %v192 = vunpack.c.h.b16 %v51
  %v193 = vunpack.c.l.b16 %v52
  %v194 = vunpack.c.l.b16 %v53
  %v195 = vunpack.c.h.b16 %v53
  %v196 = vunpack.c.l.b16 %v54
  %v197 = vunpack.c.h.b16 %v54
  %v198 = vunpack.c.l.b16 %v55
  %v199 = vunpack.c.h.b16 %v55
  %v200 = vunpack.c.l.b16 %v56
  %v201 = vunpack.c.l.b16 %v57
  %v202 = vunpack.c.h.b16 %v57
  %v203 = vunpack.c.l.b16 %v58
  %v204 = vunpack.c.h.b16 %v58
  %v205 = vunpack.c.l.b16 %v59
  %v206 = vunpack.c.h.b16 %v59
  %v207 = vunpack.c.l.b16 %v60
  %v208 = vunpack.c.l.b16 %v61
  %v209 = vunpack.c.h.b16 %v61
  %v210 = vunpack.c.l.b16 %v62
  %v211 = vunpack.c.h.b16 %v62
  %v212 = vunpack.c.l.b16 %v63
  %v213 = vunpack.c.h.b16 %v63
  %v214 = vunpack.c.l.b16 %v64
  %v215 = vunpack.c.l.b16 %v65
  %v216 = vunpack.c.h.b16 %v65
  %v217 = vunpack.c.l.b16 %v66
  %v218 = vunpack.c.h.b16 %v66
  %v219 = vunpack.c.l.b16 %v67
  %v220 = vunpack.c.h.b16 %v67
  %v221 = vunpack.c.l.b16 %v68
  %v222 = vunpack.c.l.b16 %v69
  %v223 = vunpack.c.h.b16 %v69
  %v224 = vunpack.c.l.b16 %v70
  %v225 = vunpack.c.h.b16 %v70
  %v226 = vunpack.c.l.b16 %v71
  %v227 = vunpack.c.h.b16 %v71
  %v228 = vunpack.c.l.b16 %v72
  %v229 = vunpack.c.l.b16 %v73
  %v230 = vunpack.c.h.b16 %v73
  %v231 = vunpack.c.l.b16 %v74
  %v232 = vunpack.c.h.b16 %v74
  %v233 = vunpack.c.l.b16 %v75
  %v234 = vunpack.c.h.b16 %v75
  %v235 = vunpack.c.l.b16 %v76
  %v236 = vunpack.c.l.b16 %v77
  %v237 = vunpack.c.h.b16 %v77
  %v238 = vunpack.c.l.b16 %v78
  %v239 = vunpack.c.h.b16 %v78
  %v240 = vunpack.c.l.b16 %v79
  %v241 = vunpack.c.h.b16 %v79
  %v242 = vunpack.c.l.b16 %v80
  %v243 = vunpack.c.l.b16 %v81
  %v244 = vunpack.c.h.b16 %v81
  %v245 = vunpack.c.l.b16 %v82
  %v246 = vunpack.c.h.b16 %v82
  %v247 = vunpack.c.l.b16 %v83
  %v248 = vunpack.c.h.b16 %v83
  %v249 = vunpack.c.l.b16 %v84
  %v250 = vunpack.c.l.b16 %v85
  %v251 = vunpack.c.h.b16 %v85
  %v252 = vunpack.c.l.b16 %v86
  %v253 = vunpack.c.h.b16 %v86
  %v254 = vunpack.c.l.b16 %v87
  %v255 = vunpack.c.h.b16 %v87
  %v256 = vunpack.c.l.b16 %v88
  %v257 = vunpack.c.l.b16 %v89
  %v258 = vunpack.c.h.b16 %v89
  %v259 = vunpack.c.l.b16 %v90
  %v260 = vunpack.c.h.b16 %v90
  %v261 = vunpack.c.l.b16 %v91
  %v262 = vunpack.c.h.b16 %v91
  %v263 = vunpack.c.l.b16 %v92
  %v264 = vunpack.c.l.b16 %v93
  %v265 = vunpack.c.h.b16 %v93
  %v266 = vunpack.c.l.b16 %v94
  %v267 = vunpack.c.h.b16 %v94
  %v268 = vunpack.c.l.b16 %v95
  %v269 = vunpack.c.h.b16 %v95
  %v270 = vunpack.c.l.b16 %v96
  %v271 = vunpack.c.l.b16 %v97
  %v272 = vunpack.c.h.b16 %v97
  %v273 = vunpack.c.l.b16 %v98
  %v274 = vunpack.c.h.b16 %v98
  %v275 = vunpack.c.l.b16 %v99
  %v276 = vunpack.c.h.b16 %v99
  %v277 = vunpack.c.l.b16 %v100
  %v278 = vunpack.c.l.b16 %v101
  %v279 = vunpack.c.h.b16 %v101
  %v280 = vunpack.c.l.b16 %v102
  %v281 = vunpack.c.h.b16 %v102
  %v282 = vunpack.c.l.b16 %v103
  %v283 = vunpack.c.h.b16 %v103
  %v284 = vunpack.c.l.b16 %v104
  %v285 = vpack.c.b16 %v180, %v173
  %v286 = vpack.c.b16 %v181, %v174
  %v287 = vpack.c.b16 %v182, %v175
  %v288 = vpack.c.b16 %v183, %v176
  %v289 = vpack.c.b16 %v184, %v177
  %v290 = vpack.c.b16 %v185, %v178
  %v291 = vpack.c.b16 %v186, %v179
  %v292 = vpack.c.b16 %v194, %v187
  %v293 = vpack.c.b16 %v195, %v188
  %v294 = vpack.c.b16 %v196, %v189
  %v295 = vpack.c.b16 %v197, %v190
  %v296 = vpack.c.b16 %v198, %v191
  %v297 = vpack.c.b16 %v199, %v192
  %v298 = vpack.c.b16 %v200, %v193
  %v299 = vpack.c.b16 %v208, %v201
  %v300 = vpack.c.b16 %v209, %v202
  %v301 = vpack.c.b16 %v210, %v203
  %v302 = vpack.c.b16 %v211, %v204
  %v303 = vpack.c.b16 %v212, %v205
  %v304 = vpack.c.b16 %v213, %v206
  %v305 = vpack.c.b16 %v214, %v207
  %v306 = vpack.c.b16 %v222, %v215
  %v307 = vpack.c.b16 %v223, %v216
  %v308 = vpack.c.b16 %v224, %v217
  %v309 = vpack.c.b16 %v225, %v218
  %v310 = vpack.c.b16 %v226, %v219
  %v311 = vpack.c.b16 %v227, %v220
  %v312 = vpack.c.b16 %v228, %v221
  %v313 = vpack.c.b16 %v236, %v229
  %v314 = vpack.c.b16 %v237, %v230
  %v315 = vpack.c.b16 %v238, %v231
  %v316 = vpack.c.b16 %v239, %v232
  %v317 = vpack.c.b16 %v240, %v233
  %v318 = vpack.c.b16 %v241, %v234
  %v319 = vpack.c.b16 %v242, %v235
  %v320 = vpack.c.b16 %v250, %v243
  %v321 = vpack.c.b16 %v251, %v244
  %v322 = vpack.c.b16 %v252, %v245
  %v323 = vpack.c.b16 %v253, %v246
  %v324 = vpack.c.b16 %v254, %v247
  %v325 = vpack.c.b16 %v255, %v248
  %v326 = vpack.c.b16 %v256, %v249
  %v327 = vpack.c.b16 %v264, %v257
  %v328 = vpack.c.b16 %v265, %v258
  %v329 = vpack.c.b16 %v266, %v259
  %v330 = vpack.c.b16 %v267, %v260
  %v331 = vpack.c.b16 %v268, %v261
  %v332 = vpack.c.b16 %v269, %v262
  %v333 = vpack.c.b16 %v270, %v263
  %v334 = vpack.c.b16 %v278, %v271
  %v335 = vpack.c.b16 %v279, %v272
  %v336 = vpack.c.b16 %v280, %v273
  %v337 = vpack.c.b16 %v281, %v274
  %v338 = vpack.c.b16 %v282, %v275
  %v339 = vpack.c.b16 %v283, %v276
  %v340 = vpack.c.b16 %v284, %v277
  %vm389 = vcmask 130048
  %v391 = vsel %vm389, %v40, 0
  %v394 = vsel %vm389, %v291, 0
  %v397 = vsel %vm389, %v298, 0
  %v400 = vsel %vm389, %v305, 0
  %v403 = vsel %vm389, %v312, 0
  %v406 = vsel %vm389, %v319, 0
  %v409 = vsel %vm389, %v326, 0
  %v412 = vsel %vm389, %v333, 0
  %v415 = vsel %vm389, %v340, 0
  %417 = vmatpush.bf16.xpose.msra.mxu0 %v334
  %418 = vmatpush.bf16.xpose.msra.mxu0 %v327
  %419 = vmatpush.bf16.xpose.msra.mxu0 %v320
  %420 = vmatpush.bf16.xpose.msra.mxu0 %v313
  %421 = vmatpush.bf16.xpose.msra.mxu0 %v306
  %422 = vmatpush.bf16.xpose.msra.mxu0 %v299
  %423 = vmatpush.bf16.xpose.msra.mxu0 %v292
  %424 = vmatpush.bf16.xpose.msra.mxu0 %v285
  %425 = vmatmul.bf16.gmra.mxu0 %v34
  %v426 = vpop.f32.mrf.mxu0
  %v427 = vadd.f32 %v107, %v426
  %v428 = vpop.f32.mrf.mxu0
  %v429 = vadd.f32 %v107, %v428
  %430 = vdwg.mxu0
  %431 = vmatpush.bf16.xpose.msra.mxu0 %v335
  %432 = vmatpush.bf16.xpose.msra.mxu0 %v328
  %433 = vmatpush.bf16.xpose.msra.mxu0 %v321
  %434 = vmatpush.bf16.xpose.msra.mxu0 %v314
  %435 = vmatpush.bf16.xpose.msra.mxu0 %v307
  %436 = vmatpush.bf16.xpose.msra.mxu0 %v300
  %437 = vmatpush.bf16.xpose.msra.mxu0 %v293
  %438 = vmatpush.bf16.xpose.msra.mxu0 %v286
  %439 = vmatmul.bf16.gmra.mxu0 %v35
  %v440 = vpop.f32.mrf.mxu0
  %v441 = vadd.f32 %v427, %v440
  %v442 = vpop.f32.mrf.mxu0
  %v443 = vadd.f32 %v429, %v442
  %444 = vdwg.mxu0
  %445 = vmatpush.bf16.xpose.msra.mxu0 %v336
  %446 = vmatpush.bf16.xpose.msra.mxu0 %v329
  %447 = vmatpush.bf16.xpose.msra.mxu0 %v322
  %448 = vmatpush.bf16.xpose.msra.mxu0 %v315
  %449 = vmatpush.bf16.xpose.msra.mxu0 %v308
  %450 = vmatpush.bf16.xpose.msra.mxu0 %v301
  %451 = vmatpush.bf16.xpose.msra.mxu0 %v294
  %452 = vmatpush.bf16.xpose.msra.mxu0 %v287
  %453 = vmatmul.bf16.gmra.mxu0 %v36
  %v454 = vpop.f32.mrf.mxu0
  %v455 = vadd.f32 %v441, %v454
  %v456 = vpop.f32.mrf.mxu0
  %v457 = vadd.f32 %v443, %v456
  %458 = vdwg.mxu0
  %459 = vmatpush.bf16.xpose.msra.mxu0 %v337
  %460 = vmatpush.bf16.xpose.msra.mxu0 %v330
  %461 = vmatpush.bf16.xpose.msra.mxu0 %v323
  %462 = vmatpush.bf16.xpose.msra.mxu0 %v316
  %463 = vmatpush.bf16.xpose.msra.mxu0 %v309
  %464 = vmatpush.bf16.xpose.msra.mxu0 %v302
  %465 = vmatpush.bf16.xpose.msra.mxu0 %v295
  %466 = vmatpush.bf16.xpose.msra.mxu0 %v288
  %467 = vmatmul.bf16.gmra.mxu0 %v37
  %v468 = vpop.f32.mrf.mxu0
  %v469 = vadd.f32 %v455, %v468
  %v470 = vpop.f32.mrf.mxu0
  %v471 = vadd.f32 %v457, %v470
  %472 = vdwg.mxu0
  %473 = vmatpush.bf16.xpose.msra.mxu0 %v338
  %474 = vmatpush.bf16.xpose.msra.mxu0 %v331
  %475 = vmatpush.bf16.xpose.msra.mxu0 %v324
  %476 = vmatpush.bf16.xpose.msra.mxu0 %v317
  %477 = vmatpush.bf16.xpose.msra.mxu0 %v310
  %478 = vmatpush.bf16.xpose.msra.mxu0 %v303
  %479 = vmatpush.bf16.xpose.msra.mxu0 %v296
  %480 = vmatpush.bf16.xpose.msra.mxu0 %v289
  %481 = vmatmul.bf16.gmra.mxu0 %v38
  %v482 = vpop.f32.mrf.mxu0
  %v483 = vadd.f32 %v469, %v482
  %v484 = vpop.f32.mrf.mxu0
  %v485 = vadd.f32 %v471, %v484
  %486 = vdwg.mxu0
  %487 = vmatpush.bf16.xpose.msra.mxu0 %v339
  %488 = vmatpush.bf16.xpose.msra.mxu0 %v332
  %489 = vmatpush.bf16.xpose.msra.mxu0 %v325
  %490 = vmatpush.bf16.xpose.msra.mxu0 %v318
  %491 = vmatpush.bf16.xpose.msra.mxu0 %v311
  %492 = vmatpush.bf16.xpose.msra.mxu0 %v304
  %493 = vmatpush.bf16.xpose.msra.mxu0 %v297
  %494 = vmatpush.bf16.xpose.msra.mxu0 %v290
  %495 = vmatmul.bf16.gmra.mxu0 %v39
  %v496 = vpop.f32.mrf.mxu0
  %v497 = vadd.f32 %v483, %v496
  %v498 = vpop.f32.mrf.mxu0
  %v499 = vadd.f32 %v485, %v498
  %500 = vdwg.mxu0
  %501 = vmatpush.bf16.xpose.msra.mxu0 %v415
  %502 = vmatpush.bf16.xpose.msra.mxu0 %v412
  %503 = vmatpush.bf16.xpose.msra.mxu0 %v409
  %504 = vmatpush.bf16.xpose.msra.mxu0 %v406
  %505 = vmatpush.bf16.xpose.msra.mxu0 %v403
  %506 = vmatpush.bf16.xpose.msra.mxu0 %v400
  %507 = vmatpush.bf16.xpose.msra.mxu0 %v397
  %508 = vmatpush.bf16.xpose.msra.mxu0 %v394
  %509 = vmatmul.bf16.gmra.mxu0 %v391
  %v510 = vpop.f32.mrf.mxu0
  %v511 = vadd.f32 %v497, %v510
  %v512 = vpop.f32.mrf.mxu0
  %v513 = vadd.f32 %v499, %v512
  %514 = vdwg.mxu0
  %v515 = vmax.f32 %v511, 0.0
  %v516 = vmax.f32 %v513, 0.0
  %v517 = vpack.c.bf16 %v516, %v515
  %v518 = vld [vmem:[%s3] sm:$0xf]
  %v519 = vld [vmem:[%s3 + $0x4] sm:$0xf]
  %v520 = vld [vmem:[%s3 + $0x8] sm:$0xf]
  %v521 = vld [vmem:[%s3 + $0xc] sm:$0xf]
  %v522 = vld [vmem:[%s3 + $0x10] sm:$0xf]
  %v523 = vld [vmem:[%s3 + $0x14] sm:$0xf]
  %v524 = vld [vmem:[%s3 + $0x18] sm:$0xf]
  %v525 = vld [vmem:[%s3 + $0x1c] sm:$0xf]
  %v526 = vld [vmem:[%s3 + $0x20] sm:$0xf]
  %v527 = vld [vmem:[%s3 + $0x24] sm:$0xf]
  %v528 = vld [vmem:[%s3 + $0x28] sm:$0xf]
  %v529 = vld [vmem:[%s3 + $0x2c] sm:$0xf]
  %v530 = vld [vmem:[%s3 + $0x30] sm:$0xf]
  %v531 = vld [vmem:[%s3 + $0x34] sm:$0xf]
  %v532 = vld [vmem:[%s3 + $0x38] sm:$0xf]
  %v533 = vld [vmem:[%s3 + $0x3c] sm:$0xf]
  %v534 = vld [vmem:[%s4] sm:$0x1]
  %v536 = vperm.slane %v534, 0
  %v554 = vunpack.c.l.b16 %v518
  %v555 = vunpack.c.l.b16 %v519
  %v556 = vunpack.c.l.b16 %v520
  %v557 = vunpack.c.l.b16 %v521
  %v558 = vunpack.c.l.b16 %v522
  %v559 = vunpack.c.l.b16 %v523
  %v560 = vunpack.c.l.b16 %v524
  %v561 = vunpack.c.l.b16 %v525
  %v562 = vunpack.c.l.b16 %v526
  %v563 = vunpack.c.l.b16 %v527
  %v564 = vunpack.c.l.b16 %v528
  %v565 = vunpack.c.l.b16 %v529
  %v566 = vunpack.c.l.b16 %v530
  %v567 = vunpack.c.l.b16 %v531
  %v568 = vunpack.c.l.b16 %v532
  %v569 = vunpack.c.l.b16 %v533
  %v570 = vpack.c.b16 %v555, %v554
  %v571 = vpack.c.b16 %v557, %v556
  %v572 = vpack.c.b16 %v559, %v558
  %v573 = vpack.c.b16 %v561, %v560
  %v574 = vpack.c.b16 %v563, %v562
  %v575 = vpack.c.b16 %v565, %v564
  %v576 = vpack.c.b16 %v567, %v566
  %v577 = vpack.c.b16 %v569, %v568
  %586 = vmatpush.bf16.xpose.msra.mxu0 %v577
  %587 = vmatpush.bf16.xpose.msra.mxu0 %v576
  %588 = vmatpush.bf16.xpose.msra.mxu0 %v575
  %589 = vmatpush.bf16.xpose.msra.mxu0 %v574
  %590 = vmatpush.bf16.xpose.msra.mxu0 %v573
  %591 = vmatpush.bf16.xpose.msra.mxu0 %v572
  %592 = vmatpush.bf16.xpose.msra.mxu0 %v571
  %593 = vmatpush.bf16.xpose.msra.mxu0 %v570
  %594 = vmatmul.bf16.gmra.mxu0 %v517
  %v595 = vpop.f32.mrf.mxu0
  %v596 = vadd.f32 %v536, %v595
  %v597 = vpop.f32.mrf.mxu0
  %v598 = vadd.f32 %v536, %v597
  %599 = vdwg.mxu0
  %v600 = vpack.c.bf16 %v596, %v596
  %v601 = vpack.c.bf16 %v598, %v598
  %602 = vst [vmem:[%s5] sm:$0xf] %v600
  %603 = vst [vmem:[%s5 + $0x4] sm:$0xf] %v601
  // Predicated region
  $region22: #{simple_nn_forward.1} parent=0 // pred_check
    _
  $region23: #{simple_nn_forward.1} parent=0 // pred_check_branch
    %605 = sbr.rel (0) target = $region25
  $region24: #{simple_nn_forward.1} parent=0 // pred_region
    _
  $region25: #{simple_nn_forward.1} parent=0 // pred_fallthru
    _
  // Predicated region
  $region26: #{simple_nn_forward.1} parent=0 // pred_check
    _
  $region27: #{simple_nn_forward.1} parent=0 // pred_check_branch
    %607 = sbr.rel (0) target = $region29
  $region28: #{simple_nn_forward.1} parent=0 // pred_region
    _
  $region29: #{simple_nn_forward.1} parent=0 // pred_fallthru
    _

</llo_original>
